<compile_context>
chip_gen: v5e
topology: v5e:2x2
jax: 0.10.0
libtpu: 0.0.40
codegen_flags: <defaults>
</compile_context>

<pallas_src>
import jax
import jax.numpy as jnp
from jax.experimental import pallas as pl
from jax.experimental.pallas import tpu as pltpu

# --- synthetic ModelArgs (small, consistent with the module) -----------------
N_CONTINUOUS_STATE = 24
N_DISCRETE_STATE = 8
N_POLICY_HIDDEN = 64
N_CONTINUOUS_ACTION = 12
N_DISCRETE_ACTION = 4

INPUT_DIM = N_CONTINUOUS_STATE + N_DISCRETE_STATE      # 32
HIDDEN_DIM = N_POLICY_HIDDEN                           # 64
OUTPUT_DIM = N_CONTINUOUS_ACTION + N_DISCRETE_ACTION   # 16

PACK = 8                                               # batch rows per 128-lane row
IN_P = PACK * INPUT_DIM                                # 256
HID_P = PACK * HIDDEN_DIM                              # 512
OUT_P = PACK * OUTPUT_DIM                              # 128 (lane-dense output)

LEAKY_SLOPE = 0.01  # nn.LeakyReLU default negative_slope


def _round_up(n, m):
    return ((n + m - 1) // m) * m


# --------------------------------------------------------------------------- #
# Kernel: one batch tile of packed rows.  All operands are lane-dense.
# --------------------------------------------------------------------------- #
def mlp_kernel(x_ref, w1_ref, b1_ref, w2_ref, b2_ref, o_ref):
    x = x_ref[...].astype(jnp.bfloat16)                                # (TBP, 256)
    h = jnp.dot(x, w1_ref[...], preferred_element_type=jnp.float32)    # (TBP, 512) f32
    h = h + b1_ref[...]                                                # bias (1, 512)
    h = jnp.where(h > 0, h, LEAKY_SLOPE * h)                           # LeakyReLU (VPU)
    o = jnp.dot(h.astype(jnp.bfloat16), w2_ref[...],
                preferred_element_type=jnp.float32)                    # (TBP, 128) f32
    o_ref[...] = (o + b2_ref[...]).astype(o_ref.dtype)                 # unmasked 128-lane store


# --------------------------------------------------------------------------- #
# One-time parameter packing (block-diagonal bf16 weights, lane-tiled f32 bias)
# --------------------------------------------------------------------------- #
def _block_diag(w, pack):
    kin, kout = w.shape
    out = jnp.zeros((pack * kin, pack * kout), w.dtype)
    for j in range(pack):
        out = out.at[j * kin:(j + 1) * kin, j * kout:(j + 1) * kout].set(w)
    return out


def prepare_params(w1, b1, w2, b2):
    """Call once; returns kernel-ready packed parameters."""
    w1p = _block_diag(w1, PACK).astype(jnp.bfloat16)                   # (256, 512)
    w2p = _block_diag(w2, PACK).astype(jnp.bfloat16)                   # (512, 128)
    b1p = jnp.tile(b1.astype(jnp.float32).reshape(1, HIDDEN_DIM), (1, PACK))   # (1, 512)
    b2p = jnp.tile(b2.astype(jnp.float32).reshape(1, OUTPUT_DIM), (1, PACK))   # (1, 128)
    return w1p, b1p, w2p, b2p


def _choose_packed_tile(rows_packed, n_cores=2, min_tile=64, max_tile=1024):
    """Packed-row tile (1 packed row == 8 batch rows).

    Aims for >= 4 grid steps per TensorCore so double-buffered DMA overlap and
    the v7x megacore split both engage; clamps the batch tile to 512..8192 rows.
    """
    target = -(-rows_packed // (4 * n_cores))
    tile = _round_up(max(target, 1), 8)          # sublane alignment
    tile = max(min_tile, min(tile, max_tile))
    tile = min(tile, _round_up(rows_packed, 8))  # don't wildly exceed the array
    return tile


# --------------------------------------------------------------------------- #
# Forward wrapper (jitted).  x: (B, INPUT_DIM) f32  ->  (B, OUTPUT_DIM) f32
# --------------------------------------------------------------------------- #
@jax.jit
def net_forward(x, w1p, b1p, w2p, b2p):
    B = x.shape[0]
    B8 = _round_up(B, PACK)
    if B8 != B:                                   # at most PACK-1 pad rows
        x = jnp.pad(x, ((0, B8 - B), (0, 0)))
    rows = B8 // PACK
    xp = x.reshape(rows, IN_P)                    # free row-major reshape (bitcast)

    tbp = _choose_packed_tile(rows)
    grid = (pl.cdiv(rows, tbp),)                  # ragged last block handled by Pallas

    flops = 2 * rows * (IN_P * HID_P + HID_P * OUT_P)
    bytes_accessed = (rows * IN_P * 4 + rows * OUT_P * 4
                      + IN_P * HID_P * 2 + HID_P * OUT_P * 2
                      + (HID_P + OUT_P) * 4)

    out_packed = pl.pallas_call(
        mlp_kernel,
        out_shape=jax.ShapeDtypeStruct((rows, OUT_P), jnp.float32),
        grid=grid,
        in_specs=[
            pl.BlockSpec((tbp, IN_P), lambda i: (i, 0)),      # x: streamed f32 tiles
            pl.BlockSpec((IN_P, HID_P), lambda i: (0, 0)),    # w1: VMEM-resident bf16
            pl.BlockSpec((1, HID_P), lambda i: (0, 0)),       # b1: resident f32
            pl.BlockSpec((HID_P, OUT_P), lambda i: (0, 0)),   # w2: resident bf16
            pl.BlockSpec((1, OUT_P), lambda i: (0, 0)),       # b2: resident f32
        ],
        out_specs=pl.BlockSpec((tbp, OUT_P), lambda i: (i, 0)),
        compiler_params=pltpu.CompilerParams(
            dimension_semantics=("parallel",),    # shard batch grid across TCs (v7x)
        ),
        cost_estimate=pl.CostEstimate(flops=flops, transcendentals=0,
                                      bytes_accessed=bytes_accessed),
    )(xp, w1p, b1p, w2p, b2p)

    out = out_packed.reshape(B8, OUTPUT_DIM)      # free row-major reshape (unpack)
    if B8 != B:
        out = out[:B]
    return out


# --------------------------------------------------------------------------- #
# Pure-JAX reference mirroring the kernel's bf16 matmul / f32 accumulate math
# --------------------------------------------------------------------------- #
def net_forward_ref(x, w1, b1, w2, b2):
    xb = x.astype(jnp.bfloat16)
    h = jnp.dot(xb, w1.astype(jnp.bfloat16), preferred_element_type=jnp.float32) + b1
    h = jnp.where(h > 0, h, LEAKY_SLOPE * h)
    o = jnp.dot(h.astype(jnp.bfloat16), w2.astype(jnp.bfloat16),
                preferred_element_type=jnp.float32) + b2
    return o


def init_params(key):
    """Deterministic init (shapes match nn.Linear; stored transposed as [in, out])."""
    k1, k2, k3, k4 = jax.random.split(key, 4)
    lim1 = 1.0 / jnp.sqrt(INPUT_DIM)
    lim2 = 1.0 / jnp.sqrt(HIDDEN_DIM)
    w1 = jax.random.uniform(k1, (INPUT_DIM, HIDDEN_DIM), jnp.float32, -lim1, lim1)
    b1 = jax.random.uniform(k2, (1, HIDDEN_DIM), jnp.float32, -lim1, lim1)
    w2 = jax.random.uniform(k3, (HIDDEN_DIM, OUTPUT_DIM), jnp.float32, -lim2, lim2)
    b2 = jax.random.uniform(k4, (1, OUTPUT_DIM), jnp.float32, -lim2, lim2)
    return w1, b1, w2, b2


if __name__ == "__main__":
    key = jax.random.PRNGKey(0)
    k_x, k_p = jax.random.split(key)
    w1, b1, w2, b2 = init_params(k_p)
    packed = prepare_params(w1, b1, w2, b2)       # done once, reused every call

    # B=1000: multiple of 8 (no pad copy), 125 packed rows -> 2 grid steps with a
    # ragged last block; exercises streaming + megacore split.
    B = 1000
    x = jax.random.normal(k_x, (B, INPUT_DIM), jnp.float32)
    out = jax.block_until_ready(net_forward(x, *packed))
    ref = net_forward_ref(x, w1, b1, w2, b2)
    assert out.shape == (B, OUTPUT_DIM)
    assert jnp.allclose(out, ref, atol=1e-2, rtol=1e-2), (
        float(jnp.max(jnp.abs(out - ref))))

    # B=37: exercises the pad-to-multiple-of-8 path and a single partial block.
    B2 = 37
    x2 = jax.random.normal(k_x, (B2, INPUT_DIM), jnp.float32)
    out2 = jax.block_until_ready(net_forward(x2, *packed))
    ref2 = net_forward_ref(x2, w1, b1, w2, b2)
    assert out2.shape == (B2, OUTPUT_DIM)
    assert jnp.allclose(out2, ref2, atol=1e-2, rtol=1e-2), (
        float(jnp.max(jnp.abs(out2 - ref2))))

    print("KERNEL_OK")
</pallas_src>

<mosaic_0001>
module attributes {stable_mosaic.version = 11 : i64} {
  func.func @mlp_kernel(%arg0: i32, %arg1: memref<64x256xf32, #tpu.memory_space<vmem>>, %arg2: memref<256x512xbf16, #tpu.memory_space<vmem>>, %arg3: memref<1x512xf32, #tpu.memory_space<vmem>>, %arg4: memref<512x128xbf16, #tpu.memory_space<vmem>>, %arg5: memref<1x128xf32, #tpu.memory_space<vmem>>, %arg6: memref<64x128xf32, #tpu.memory_space<vmem>>) attributes {dimension_semantics = [#tpu.dimension_semantics<parallel>], iteration_bounds = array<i64: 2>, scalar_prefetch = 0 : i64, scratch_operands = 0 : i64, tpu.core_type = #tpu.core_type<tc>, window_params = [{transform_indices = @transform_0, window_bounds = array<i64: 64, 256>}, {pipeline_mode = #tpu.pipeline_mode<synchronous>, transform_indices = @transform_1, window_bounds = array<i64: 256, 512>}, {pipeline_mode = #tpu.pipeline_mode<synchronous>, transform_indices = @transform_2, window_bounds = array<i64: 1, 512>}, {pipeline_mode = #tpu.pipeline_mode<synchronous>, transform_indices = @transform_3, window_bounds = array<i64: 512, 128>}, {pipeline_mode = #tpu.pipeline_mode<synchronous>, transform_indices = @transform_4, window_bounds = array<i64: 1, 128>}, {transform_indices = @transform_5, window_bounds = array<i64: 64, 128>}]} {
    %c0 = arith.constant 0 : index
    %c0_0 = arith.constant 0 : index
    %0 = vector.load %arg1[%c0, %c0_0] : memref<64x256xf32, #tpu.memory_space<vmem>>, vector<64x256xf32>
    %1 = arith.truncf %0 : vector<64x256xf32> to vector<64x256xbf16>
    %c0_1 = arith.constant 0 : index
    %c0_2 = arith.constant 0 : index
    %2 = vector.load %arg2[%c0_1, %c0_2] : memref<256x512xbf16, #tpu.memory_space<vmem>>, vector<256x512xbf16>
    %cst = arith.constant dense<0.000000e+00> : vector<64x512xf32>
    %3 = tpu.matmul %1, %2, %cst {dimension_numbers = #tpu.dot_dimension_numbers<[1], [0], [0], [1], [0, 0, 1, 1], [], []>} : vector<64x256xbf16>, vector<256x512xbf16>, vector<64x512xf32> -> vector<64x512xf32>
    %c0_3 = arith.constant 0 : index
    %c0_4 = arith.constant 0 : index
    %4 = vector.load %arg3[%c0_3, %c0_4] : memref<1x512xf32, #tpu.memory_space<vmem>>, vector<1x512xf32>
    %5 = vector.broadcast %4 : vector<1x512xf32> to vector<64x512xf32>
    %6 = arith.addf %3, %5 : vector<64x512xf32>
    %cst_5 = arith.constant 0.000000e+00 : f32
    %7 = vector.broadcast %cst_5 : f32 to vector<64x512xf32>
    %8 = arith.cmpf ogt, %6, %7 : vector<64x512xf32>
    %cst_6 = arith.constant 0.00999999977 : f32
    %9 = vector.broadcast %cst_6 : f32 to vector<64x512xf32>
    %10 = arith.mulf %9, %6 : vector<64x512xf32>
    %11 = arith.select %8, %6, %10 : vector<64x512xi1>, vector<64x512xf32>
    %12 = arith.truncf %11 : vector<64x512xf32> to vector<64x512xbf16>
    %c0_7 = arith.constant 0 : index
    %c0_8 = arith.constant 0 : index
    %13 = vector.load %arg4[%c0_7, %c0_8] : memref<512x128xbf16, #tpu.memory_space<vmem>>, vector<512x128xbf16>
    %cst_9 = arith.constant dense<0.000000e+00> : vector<64x128xf32>
    %14 = tpu.matmul %12, %13, %cst_9 {dimension_numbers = #tpu.dot_dimension_numbers<[1], [0], [0], [1], [0, 0, 1, 1], [], []>} : vector<64x512xbf16>, vector<512x128xbf16>, vector<64x128xf32> -> vector<64x128xf32>
    %c0_10 = arith.constant 0 : index
    %c0_11 = arith.constant 0 : index
    %15 = vector.load %arg5[%c0_10, %c0_11] : memref<1x128xf32, #tpu.memory_space<vmem>>, vector<1x128xf32>
    %16 = vector.broadcast %15 : vector<1x128xf32> to vector<64x128xf32>
    %17 = arith.addf %14, %16 : vector<64x128xf32>
    %c0_12 = arith.constant 0 : index
    %c0_13 = arith.constant 0 : index
    %18 = vector.load %arg6[%c0_12, %c0_13] : memref<64x128xf32, #tpu.memory_space<vmem>>, vector<64x128xf32>
    tpu.vector_store %arg6[%c0_12, %c0_13], %17 {strides = array<i32>} : memref<64x128xf32, #tpu.memory_space<vmem>>, vector<64x128xf32>,
    return
  }
  func.func @transform_0(%arg0: i32) -> (i32, i32) {
    %c0_i32 = arith.constant 0 : i32
    %c0_i32_0 = arith.constant 0 : i32
    return %arg0, %c0_i32 : i32, i32
  }
  func.func @transform_1(%arg0: i32) -> (i32, i32) {
    %c0_i32 = arith.constant 0 : i32
    %c0_i32_0 = arith.constant 0 : i32
    %c0_i32_1 = arith.constant 0 : i32
    return %c0_i32, %c0_i32_0 : i32, i32
  }
  func.func @transform_2(%arg0: i32) -> (i32, i32) {
    %c0_i32 = arith.constant 0 : i32
    %c0_i32_0 = arith.constant 0 : i32
    %c0_i32_1 = arith.constant 0 : i32
    return %c0_i32, %c0_i32_0 : i32, i32
  }
  func.func @transform_3(%arg0: i32) -> (i32, i32) {
    %c0_i32 = arith.constant 0 : i32
    %c0_i32_0 = arith.constant 0 : i32
    %c0_i32_1 = arith.constant 0 : i32
    return %c0_i32, %c0_i32_0 : i32, i32
  }
  func.func @transform_4(%arg0: i32) -> (i32, i32) {
    %c0_i32 = arith.constant 0 : i32
    %c0_i32_0 = arith.constant 0 : i32
    %c0_i32_1 = arith.constant 0 : i32
    return %c0_i32, %c0_i32_0 : i32, i32
  }
  func.func @transform_5(%arg0: i32) -> (i32, i32) {
    %c0_i32 = arith.constant 0 : i32
    %c0_i32_0 = arith.constant 0 : i32
    return %arg0, %c0_i32 : i32, i32
  }
}

</mosaic_0001>

<llo_original>
// kernel: net_forward.1
$region0: #{net_forward.1}
  #allocation0 [shape = 'u32[]', space=smem, size = 0x4, offset = 0x4, fixed_abs, tag = 'smem constant byte address 0x4 - core index']
  #allocation1 [shape = 'u32[72,128]{1,0:T(1,128)}', space=vmem, size = 0x9000, scoped, tag = 'internal scratch']
  %s0 = inlined_call_operand.vmem [shape: f32[125,256], index: 0, kind: input, shape index: {}]
  %s1 = inlined_call_operand.vmem [shape: bf16[256,512], index: 1, kind: input, shape index: {}]
  %s2 = inlined_call_operand.vmem [shape: f32[1,512], index: 2, kind: input, shape index: {}]
  %s3 = inlined_call_operand.vmem [shape: bf16[512,128], index: 3, kind: input, shape index: {}]
  %s4 = inlined_call_operand.vmem [shape: f32[1,128], index: 4, kind: input, shape index: {}]
  %s5 = inlined_call_operand.vmem [shape: f32[125,128], index: 5, kind: output, shape index: {}]
  %s6 = sld [smem:[#allocation0]]
  $region53: #{net_forward.1} parent=0
    _
  %s8 = ssub.s32 1, %s6
  %s9 = scalar_select 0, %s8, %s6
  loop: start=0, step=1, limit=4
  $region2: #{net_forward.1} parent=0 // loop_pre_header
    _
  $region3: #{net_forward.1} parent=0 // loop_header
    %s11 = sphi 0, %s15
    %p12 = scmp.ge.s32.totalorder %s11, 4
    %s21 = sphi 0, %s23
    %s24 = sphi 0, %s21
    %s25 = sphi 0, %s24
    %s41 = sphi 0, %s25
    %s45 = sphi 0, %s45
    %s47 = sphi 0, %s45
    %s48 = sphi 0, %s47
    %s62 = sphi 0, %s48
    %s66 = sphi 0, %s66
    %s68 = sphi 0, %s66
    %s69 = sphi 0, %s68
    %s83 = sphi 0, %s69
    %s87 = sphi 0, %s87
    %s89 = sphi 0, %s87
    %s90 = sphi 0, %s89
    %s104 = sphi 0, %s90
    %s108 = sphi 0, %s108
    %s110 = sphi 0, %s108
    %s111 = sphi 0, %s110
    %s125 = sphi 0, %s111
    %s131 = sphi 0, %s133
    %s134 = sphi 0, %s131
    %s135 = sphi 0, %s134
    %s151 = sphi 0, %s135
  $region4: #{net_forward.1} parent=0 // loop_header_branch
    %14 = sbr.rel (%p12) target = $region8
  $region5: #{net_forward.1} parent=0 // loop_body
    %s16 = ssub.s32 %s11, 1
    %s17 = ssub.s32 %s11, 2
    %s18 = sadd.s32 %s11, 1
    %s19 = ssub.s32 %s11, %s18
    %p20 = scmp.eq.s32.totalorder %s19, 0
    %s22 = sadd.s32 %s21, 1
    %s23 = scalar_select %p20, %s21, %s22
    %p26 = pneg %p20
    %p27 = scmp.eq.s32.totalorder %s11, 1
    %p28 = por %p26, %p27
    %p29 = scmp.ne.s32.totalorder %s21, %s24
    %p30 = scmp.eq.s32.totalorder %s11, 0
    %p31 = por %p29, %p30
    %p32 = scmp.ne.s32.totalorder %s21, %s24
    %p33 = scmp.eq.s32.totalorder %s16, 1
    %p34 = por %p32, %p33
    %p35 = scmp.ne.s32.totalorder %s24, %s25
    %p36 = scmp.eq.s32.totalorder %s16, 0
    %p37 = por %p35, %p36
    %p38 = scmp.ne.s32.totalorder %s24, %s25
    %p39 = scmp.eq.s32.totalorder %s17, 1
    %p40 = por %p38, %p39
    %p42 = scmp.ne.s32.totalorder %s25, %s41
    %p43 = scmp.eq.s32.totalorder %s17, 0
    %p44 = por %p42, %p43
    %s46 = sadd.s32 %s45, 1
    %p49 = scmp.eq.s32.totalorder %s11, 1
    %p50 = scmp.ne.s32.totalorder %s45, %s47
    %p51 = scmp.eq.s32.totalorder %s11, 0
    %p52 = por %p50, %p51
    %p53 = scmp.ne.s32.totalorder %s45, %s47
    %p54 = scmp.eq.s32.totalorder %s16, 1
    %p55 = por %p53, %p54
    %p56 = scmp.ne.s32.totalorder %s47, %s48
    %p57 = scmp.eq.s32.totalorder %s16, 0
    %p58 = por %p56, %p57
    %p59 = scmp.ne.s32.totalorder %s47, %s48
    %p60 = scmp.eq.s32.totalorder %s17, 1
    %p61 = por %p59, %p60
    %p63 = scmp.ne.s32.totalorder %s48, %s62
    %p64 = scmp.eq.s32.totalorder %s17, 0
    %p65 = por %p63, %p64
    %s67 = sadd.s32 %s66, 1
    %p70 = scmp.eq.s32.totalorder %s11, 1
    %p71 = scmp.ne.s32.totalorder %s66, %s68
    %p72 = scmp.eq.s32.totalorder %s11, 0
    %p73 = por %p71, %p72
    %p74 = scmp.ne.s32.totalorder %s66, %s68
    %p75 = scmp.eq.s32.totalorder %s16, 1
    %p76 = por %p74, %p75
    %p77 = scmp.ne.s32.totalorder %s68, %s69
    %p78 = scmp.eq.s32.totalorder %s16, 0
    %p79 = por %p77, %p78
    %p80 = scmp.ne.s32.totalorder %s68, %s69
    %p81 = scmp.eq.s32.totalorder %s17, 1
    %p82 = por %p80, %p81
    %p84 = scmp.ne.s32.totalorder %s69, %s83
    %p85 = scmp.eq.s32.totalorder %s17, 0
    %p86 = por %p84, %p85
    %s88 = sadd.s32 %s87, 1
    %p91 = scmp.eq.s32.totalorder %s11, 1
    %p92 = scmp.ne.s32.totalorder %s87, %s89
    %p93 = scmp.eq.s32.totalorder %s11, 0
    %p94 = por %p92, %p93
    %p95 = scmp.ne.s32.totalorder %s87, %s89
    %p96 = scmp.eq.s32.totalorder %s16, 1
    %p97 = por %p95, %p96
    %p98 = scmp.ne.s32.totalorder %s89, %s90
    %p99 = scmp.eq.s32.totalorder %s16, 0
    %p100 = por %p98, %p99
    %p101 = scmp.ne.s32.totalorder %s89, %s90
    %p102 = scmp.eq.s32.totalorder %s17, 1
    %p103 = por %p101, %p102
    %p105 = scmp.ne.s32.totalorder %s90, %s104
    %p106 = scmp.eq.s32.totalorder %s17, 0
    %p107 = por %p105, %p106
    %s109 = sadd.s32 %s108, 1
    %p112 = scmp.eq.s32.totalorder %s11, 1
    %p113 = scmp.ne.s32.totalorder %s108, %s110
    %p114 = scmp.eq.s32.totalorder %s11, 0
    %p115 = por %p113, %p114
    %p116 = scmp.ne.s32.totalorder %s108, %s110
    %p117 = scmp.eq.s32.totalorder %s16, 1
    %p118 = por %p116, %p117
    %p119 = scmp.ne.s32.totalorder %s110, %s111
    %p120 = scmp.eq.s32.totalorder %s16, 0
    %p121 = por %p119, %p120
    %p122 = scmp.ne.s32.totalorder %s110, %s111
    %p123 = scmp.eq.s32.totalorder %s17, 1
    %p124 = por %p122, %p123
    %p126 = scmp.ne.s32.totalorder %s111, %s125
    %p127 = scmp.eq.s32.totalorder %s17, 0
    %p128 = por %p126, %p127
    %s129 = ssub.s32 %s11, %s18
    %p130 = scmp.eq.s32.totalorder %s129, 0
    %s132 = sadd.s32 %s131, 1
    %s133 = scalar_select %p130, %s131, %s132
    %p136 = pneg %p130
    %p137 = scmp.eq.s32.totalorder %s11, 1
    %p138 = por %p136, %p137
    %p139 = scmp.ne.s32.totalorder %s131, %s134
    %p140 = scmp.eq.s32.totalorder %s11, 0
    %p141 = por %p139, %p140
    %p142 = scmp.ne.s32.totalorder %s131, %s134
    %p143 = scmp.eq.s32.totalorder %s16, 1
    %p144 = por %p142, %p143
    %p145 = scmp.ne.s32.totalorder %s134, %s135
    %p146 = scmp.eq.s32.totalorder %s16, 0
    %p147 = por %p145, %p146
    %p148 = scmp.ne.s32.totalorder %s134, %s135
    %p149 = scmp.eq.s32.totalorder %s17, 1
    %p150 = por %p148, %p149
    %p152 = scmp.ne.s32.totalorder %s135, %s151
    %p153 = scmp.eq.s32.totalorder %s17, 0
    %p154 = por %p152, %p153
    %p155 = scmp.le.s32.totalorder 1, %s11
    %p156 = scmp.lt.s32.totalorder %s11, 3
    %p157 = pnand %p155, %p156
    %p158 = pneg %p157
    // Predicated region
    $region9: #{net_forward.1} parent=5 // pred_check
      _
    $region10: #{net_forward.1} parent=5 // pred_check_branch
      %160 = sbr.rel (%p157) target = $region12
    $region11: #{net_forward.1} parent=5 // pred_region
      %s161 = ssub.s32 %s11, 1
      // Predicated region
      $region13: #{net_forward.1} parent=11 // pred_check
        %p162 = pneg %p58
      $region14: #{net_forward.1} parent=11 // pred_check_branch
        %164 = sbr.rel (%p162) target = $region16
      $region15: #{net_forward.1} parent=11 // pred_region
        _
      $region16: #{net_forward.1} parent=11 // pred_fallthru
        _
      // Predicated region
      $region17: #{net_forward.1} parent=11 // pred_check
        %p165 = pneg %p79
      $region18: #{net_forward.1} parent=11 // pred_check_branch
        %167 = sbr.rel (%p165) target = $region20
      $region19: #{net_forward.1} parent=11 // pred_region
        _
      $region20: #{net_forward.1} parent=11 // pred_fallthru
        _
      // Predicated region
      $region21: #{net_forward.1} parent=11 // pred_check
        %p168 = pneg %p100
      $region22: #{net_forward.1} parent=11 // pred_check_branch
        %170 = sbr.rel (%p168) target = $region24
      $region23: #{net_forward.1} parent=11 // pred_region
        _
      $region24: #{net_forward.1} parent=11 // pred_fallthru
        _
      // Predicated region
      $region25: #{net_forward.1} parent=11 // pred_check
        %p171 = pneg %p121
      $region26: #{net_forward.1} parent=11 // pred_check_branch
        %173 = sbr.rel (%p171) target = $region28
      $region27: #{net_forward.1} parent=11 // pred_region
        _
      $region28: #{net_forward.1} parent=11 // pred_fallthru
        _
    $region12: #{net_forward.1} parent=5 // pred_fallthru
      _
    %p174 = scmp.lt.s32.totalorder %s11, 2
    // Predicated region
    $region29: #{net_forward.1} parent=5 // pred_check
      %p175 = pneg %p174
    $region30: #{net_forward.1} parent=5 // pred_check_branch
      %177 = sbr.rel (%p175) target = $region32
    $region31: #{net_forward.1} parent=5 // pred_region
      // Predicated region
      $region33: #{net_forward.1} parent=31 // pred_check
        %p178 = pneg %p31
      $region34: #{net_forward.1} parent=31 // pred_check_branch
        %180 = sbr.rel (%p178) target = $region36
      $region35: #{net_forward.1} parent=31 // pred_region
        %s181 = smul.u32 8, %s11
        %p182 = scmp.lt.s32.totalorder %s181, 15
        %s183 = scalar_select %p182, %s181, 15
        %s184 = smul.addr %s183, 2
        %s185 = smul.addr %s184, 8
        %s186 = scalar_lea.vmem %s0, %s185
        %s187 = smul.u32 8, %s11
      $region36: #{net_forward.1} parent=31 // pred_fallthru
        _
    $region32: #{net_forward.1} parent=5 // pred_fallthru
      _
    %p188 = scmp.le.s32.totalorder 1, %s11
    %p189 = scmp.lt.s32.totalorder %s11, 3
    %p190 = pnand %p188, %p189
    %p191 = pneg %p190
    // Predicated region
    $region37: #{net_forward.1} parent=5 // pred_check
      _
    $region38: #{net_forward.1} parent=5 // pred_check_branch
      %193 = sbr.rel (%p190) target = $region40
    $region39: #{net_forward.1} parent=5 // pred_region
      %s194 = ssub.s32 %s11, 1
      %s195 = smul.u32 8, %s16
      %p196 = scmp.lt.s32.totalorder %s195, 15
      %s197 = scalar_select %p196, %s195, 15
      %s198 = smul.addr %s197, 2
      %s199 = smul.addr %s198, 8
      %s200 = scalar_lea.vmem %s0, %s199
      %p201 = pneg %p37
      %p202 = pneg %p34
      %p203 = pneg %p58
      %p204 = pneg %p55
      %p205 = pneg %p79
      %p206 = pneg %p76
      %p207 = pneg %p100
      %p208 = pneg %p97
      %p209 = pneg %p121
      %p210 = pneg %p118
      %p211 = pneg %p147
      %p212 = pneg %p144
      %s213 = smul.u32 8, %s16
      %p214 = scmp.lt.s32.totalorder %s213, 15
      %s215 = scalar_select %p214, %s213, 15
      %s216 = smul.addr %s215, 8
      %s217 = scalar_lea.vmem %s5, %s216
      %s218 = smul.u32 8, %s16
      %p219 = scmp.lt.s32.totalorder %s218, 15
      %s220 = scalar_select %p219, %s218, 15
      %s221 = smul.addr %s220, 2
      %s222 = smul.addr %s221, 8
      %s223 = scalar_lea.vmem %s0, %s222
      %s224 = smul.u32 8, %s16
      %s225 = smul.u32 8, %s16
      %p226 = scmp.lt.s32.totalorder %s225, 15
      %s227 = scalar_select %p226, %s225, 15
      %s228 = smul.addr %s227, 8
      %s229 = scalar_lea.vmem %s5, %s228
      %s230 = smul.u32 8, %s16
      %v231 = vld [vmem:[%s223] sm:$0xff]
      %v232 = vld [vmem:[%s223 + $0x8] sm:$0xff]
      %v233 = vld [vmem:[%s223 + $0x10] sm:$0xff]
      %v234 = vld [vmem:[%s223 + $0x18] sm:$0xff]
      %v235 = vld [vmem:[%s223 + $0x20] sm:$0xff]
      %v236 = vld [vmem:[%s223 + $0x28] sm:$0xff]
      %v237 = vld [vmem:[%s223 + $0x30] sm:$0xff]
      %v238 = vld [vmem:[%s223 + $0x38] sm:$0xff]
      %v239 = vld [vmem:[%s223 + $0x40] sm:$0xff]
      %v240 = vld [vmem:[%s223 + $0x48] sm:$0xff]
      %v241 = vld [vmem:[%s223 + $0x50] sm:$0xff]
      %v242 = vld [vmem:[%s223 + $0x58] sm:$0xff]
      %v243 = vld [vmem:[%s223 + $0x60] sm:$0xff]
      %v244 = vld [vmem:[%s223 + $0x68] sm:$0xff]
      %v245 = vld [vmem:[%s223 + $0x70] sm:$0xff]
      %v246 = vld [vmem:[%s223 + $0x78] sm:$0xff]
      %v247 = vpack.c.bf16 %v233, %v231
      %v248 = vpack.c.bf16 %v234, %v232
      %v249 = vpack.c.bf16 %v237, %v235
      %v250 = vpack.c.bf16 %v238, %v236
      %v251 = vpack.c.bf16 %v241, %v239
      %v252 = vpack.c.bf16 %v242, %v240
      %v253 = vpack.c.bf16 %v245, %v243
      %v254 = vpack.c.bf16 %v246, %v244
      %v255 = vld [vmem:[%s1] sm:$0xff]
      %v256 = vld [vmem:[%s1 + $0x8] sm:$0xff]
      %v257 = vld [vmem:[%s1 + $0x10] sm:$0xff]
      %v258 = vld [vmem:[%s1 + $0x18] sm:$0xff]
      %v259 = vld [vmem:[%s1 + $0x20] sm:$0xff]
      %v260 = vld [vmem:[%s1 + $0x28] sm:$0xff]
      %v261 = vld [vmem:[%s1 + $0x30] sm:$0xff]
      %v262 = vld [vmem:[%s1 + $0x38] sm:$0xff]
      %v263 = vld [vmem:[%s1 + $0x40] sm:$0xff]
      %v264 = vld [vmem:[%s1 + $0x48] sm:$0xff]
      %v265 = vld [vmem:[%s1 + $0x50] sm:$0xff]
      %v266 = vld [vmem:[%s1 + $0x58] sm:$0xff]
      %v267 = vld [vmem:[%s1 + $0x60] sm:$0xff]
      %v268 = vld [vmem:[%s1 + $0x68] sm:$0xff]
      %v269 = vld [vmem:[%s1 + $0x70] sm:$0xff]
      %v270 = vld [vmem:[%s1 + $0x78] sm:$0xff]
      %v271 = vld [vmem:[%s1 + $0x80] sm:$0xff]
      %v272 = vld [vmem:[%s1 + $0x88] sm:$0xff]
      %v273 = vld [vmem:[%s1 + $0x90] sm:$0xff]
      %v274 = vld [vmem:[%s1 + $0x98] sm:$0xff]
      %v275 = vld [vmem:[%s1 + $0xa0] sm:$0xff]
      %v276 = vld [vmem:[%s1 + $0xa8] sm:$0xff]
      %v277 = vld [vmem:[%s1 + $0xb0] sm:$0xff]
      %v278 = vld [vmem:[%s1 + $0xb8] sm:$0xff]
      %v279 = vld [vmem:[%s1 + $0xc0] sm:$0xff]
      %v280 = vld [vmem:[%s1 + $0xc8] sm:$0xff]
      %v281 = vld [vmem:[%s1 + $0xd0] sm:$0xff]
      %v282 = vld [vmem:[%s1 + $0xd8] sm:$0xff]
      %v283 = vld [vmem:[%s1 + $0xe0] sm:$0xff]
      %v284 = vld [vmem:[%s1 + $0xe8] sm:$0xff]
      %v285 = vld [vmem:[%s1 + $0xf0] sm:$0xff]
      %v286 = vld [vmem:[%s1 + $0xf8] sm:$0xff]
      %v287 = vld [vmem:[%s1 + $0x100] sm:$0xff]
      %v288 = vld [vmem:[%s1 + $0x108] sm:$0xff]
      %v289 = vld [vmem:[%s1 + $0x110] sm:$0xff]
      %v290 = vld [vmem:[%s1 + $0x118] sm:$0xff]
      %v291 = vld [vmem:[%s1 + $0x120] sm:$0xff]
      %v292 = vld [vmem:[%s1 + $0x128] sm:$0xff]
      %v293 = vld [vmem:[%s1 + $0x130] sm:$0xff]
      %v294 = vld [vmem:[%s1 + $0x138] sm:$0xff]
      %v295 = vld [vmem:[%s1 + $0x140] sm:$0xff]
      %v296 = vld [vmem:[%s1 + $0x148] sm:$0xff]
      %v297 = vld [vmem:[%s1 + $0x150] sm:$0xff]
      %v298 = vld [vmem:[%s1 + $0x158] sm:$0xff]
      %v299 = vld [vmem:[%s1 + $0x160] sm:$0xff]
      %v300 = vld [vmem:[%s1 + $0x168] sm:$0xff]
      %v301 = vld [vmem:[%s1 + $0x170] sm:$0xff]
      %v302 = vld [vmem:[%s1 + $0x178] sm:$0xff]
      %v303 = vld [vmem:[%s1 + $0x180] sm:$0xff]
      %v304 = vld [vmem:[%s1 + $0x188] sm:$0xff]
      %v305 = vld [vmem:[%s1 + $0x190] sm:$0xff]
      %v306 = vld [vmem:[%s1 + $0x198] sm:$0xff]
      %v307 = vld [vmem:[%s1 + $0x1a0] sm:$0xff]
      %v308 = vld [vmem:[%s1 + $0x1a8] sm:$0xff]
      %v309 = vld [vmem:[%s1 + $0x1b0] sm:$0xff]
      %v310 = vld [vmem:[%s1 + $0x1b8] sm:$0xff]
      %v311 = vld [vmem:[%s1 + $0x1c0] sm:$0xff]
      %v312 = vld [vmem:[%s1 + $0x1c8] sm:$0xff]
      %v313 = vld [vmem:[%s1 + $0x1d0] sm:$0xff]
      %v314 = vld [vmem:[%s1 + $0x1d8] sm:$0xff]
      %v315 = vld [vmem:[%s1 + $0x1e0] sm:$0xff]
      %v316 = vld [vmem:[%s1 + $0x1e8] sm:$0xff]
      %v317 = vld [vmem:[%s1 + $0x1f0] sm:$0xff]
      %v318 = vld [vmem:[%s1 + $0x1f8] sm:$0xff]
      %v319 = vld [vmem:[%s2] sm:$0xf]
      %v321 = vperm.slane %v319, 0
      %v322 = vperm.slane %v319, 1
      %v323 = vperm.slane %v319, 2
      %v324 = vperm.slane %v319, 3
      %v393 = vunpack.c.l.b16 %v255
      %v394 = vunpack.c.h.b16 %v255
      %v395 = vunpack.c.l.b16 %v256
      %v396 = vunpack.c.h.b16 %v256
      %v397 = vunpack.c.l.b16 %v257
      %v398 = vunpack.c.h.b16 %v257
      %v399 = vunpack.c.l.b16 %v258
      %v400 = vunpack.c.h.b16 %v258
      %v401 = vunpack.c.l.b16 %v259
      %v402 = vunpack.c.h.b16 %v259
      %v403 = vunpack.c.l.b16 %v260
      %v404 = vunpack.c.h.b16 %v260
      %v405 = vunpack.c.l.b16 %v261
      %v406 = vunpack.c.h.b16 %v261
      %v407 = vunpack.c.l.b16 %v262
      %v408 = vunpack.c.h.b16 %v262
      %v409 = vunpack.c.l.b16 %v263
      %v410 = vunpack.c.h.b16 %v263
      %v411 = vunpack.c.l.b16 %v264
      %v412 = vunpack.c.h.b16 %v264
      %v413 = vunpack.c.l.b16 %v265
      %v414 = vunpack.c.h.b16 %v265
      %v415 = vunpack.c.l.b16 %v266
      %v416 = vunpack.c.h.b16 %v266
      %v417 = vunpack.c.l.b16 %v267
      %v418 = vunpack.c.h.b16 %v267
      %v419 = vunpack.c.l.b16 %v268
      %v420 = vunpack.c.h.b16 %v268
      %v421 = vunpack.c.l.b16 %v269
      %v422 = vunpack.c.h.b16 %v269
      %v423 = vunpack.c.l.b16 %v270
      %v424 = vunpack.c.h.b16 %v270
      %v425 = vunpack.c.l.b16 %v271
      %v426 = vunpack.c.h.b16 %v271
      %v427 = vunpack.c.l.b16 %v272
      %v428 = vunpack.c.h.b16 %v272
      %v429 = vunpack.c.l.b16 %v273
      %v430 = vunpack.c.h.b16 %v273
      %v431 = vunpack.c.l.b16 %v274
      %v432 = vunpack.c.h.b16 %v274
      %v433 = vunpack.c.l.b16 %v275
      %v434 = vunpack.c.h.b16 %v275
      %v435 = vunpack.c.l.b16 %v276
      %v436 = vunpack.c.h.b16 %v276
      %v437 = vunpack.c.l.b16 %v277
      %v438 = vunpack.c.h.b16 %v277
      %v439 = vunpack.c.l.b16 %v278
      %v440 = vunpack.c.h.b16 %v278
      %v441 = vunpack.c.l.b16 %v279
      %v442 = vunpack.c.h.b16 %v279
      %v443 = vunpack.c.l.b16 %v280
      %v444 = vunpack.c.h.b16 %v280
      %v445 = vunpack.c.l.b16 %v281
      %v446 = vunpack.c.h.b16 %v281
      %v447 = vunpack.c.l.b16 %v282
      %v448 = vunpack.c.h.b16 %v282
      %v449 = vunpack.c.l.b16 %v283
      %v450 = vunpack.c.h.b16 %v283
      %v451 = vunpack.c.l.b16 %v284
      %v452 = vunpack.c.h.b16 %v284
      %v453 = vunpack.c.l.b16 %v285
      %v454 = vunpack.c.h.b16 %v285
      %v455 = vunpack.c.l.b16 %v286
      %v456 = vunpack.c.h.b16 %v286
      %v457 = vunpack.c.l.b16 %v287
      %v458 = vunpack.c.h.b16 %v287
      %v459 = vunpack.c.l.b16 %v288
      %v460 = vunpack.c.h.b16 %v288
      %v461 = vunpack.c.l.b16 %v289
      %v462 = vunpack.c.h.b16 %v289
      %v463 = vunpack.c.l.b16 %v290
      %v464 = vunpack.c.h.b16 %v290
      %v465 = vunpack.c.l.b16 %v291
      %v466 = vunpack.c.h.b16 %v291
      %v467 = vunpack.c.l.b16 %v292
      %v468 = vunpack.c.h.b16 %v292
      %v469 = vunpack.c.l.b16 %v293
      %v470 = vunpack.c.h.b16 %v293
      %v471 = vunpack.c.l.b16 %v294
      %v472 = vunpack.c.h.b16 %v294
      %v473 = vunpack.c.l.b16 %v295
      %v474 = vunpack.c.h.b16 %v295
      %v475 = vunpack.c.l.b16 %v296
      %v476 = vunpack.c.h.b16 %v296
      %v477 = vunpack.c.l.b16 %v297
      %v478 = vunpack.c.h.b16 %v297
      %v479 = vunpack.c.l.b16 %v298
      %v480 = vunpack.c.h.b16 %v298
      %v481 = vunpack.c.l.b16 %v299
      %v482 = vunpack.c.h.b16 %v299
      %v483 = vunpack.c.l.b16 %v300
      %v484 = vunpack.c.h.b16 %v300
      %v485 = vunpack.c.l.b16 %v301
      %v486 = vunpack.c.h.b16 %v301
      %v487 = vunpack.c.l.b16 %v302
      %v488 = vunpack.c.h.b16 %v302
      %v489 = vunpack.c.l.b16 %v303
      %v490 = vunpack.c.h.b16 %v303
      %v491 = vunpack.c.l.b16 %v304
      %v492 = vunpack.c.h.b16 %v304
      %v493 = vunpack.c.l.b16 %v305
      %v494 = vunpack.c.h.b16 %v305
      %v495 = vunpack.c.l.b16 %v306
      %v496 = vunpack.c.h.b16 %v306
      %v497 = vunpack.c.l.b16 %v307
      %v498 = vunpack.c.h.b16 %v307
      %v499 = vunpack.c.l.b16 %v308
      %v500 = vunpack.c.h.b16 %v308
      %v501 = vunpack.c.l.b16 %v309
      %v502 = vunpack.c.h.b16 %v309
      %v503 = vunpack.c.l.b16 %v310
      %v504 = vunpack.c.h.b16 %v310
      %v505 = vunpack.c.l.b16 %v311
      %v506 = vunpack.c.h.b16 %v311
      %v507 = vunpack.c.l.b16 %v312
      %v508 = vunpack.c.h.b16 %v312
      %v509 = vunpack.c.l.b16 %v313
      %v510 = vunpack.c.h.b16 %v313
      %v511 = vunpack.c.l.b16 %v314
      %v512 = vunpack.c.h.b16 %v314
      %v513 = vunpack.c.l.b16 %v315
      %v514 = vunpack.c.h.b16 %v315
      %v515 = vunpack.c.l.b16 %v316
      %v516 = vunpack.c.h.b16 %v316
      %v517 = vunpack.c.l.b16 %v317
      %v518 = vunpack.c.h.b16 %v317
      %v519 = vunpack.c.l.b16 %v318
      %v520 = vunpack.c.h.b16 %v318
      %v521 = vpack.c.b16 %v397, %v393
      %v522 = vpack.c.b16 %v398, %v394
      %v523 = vpack.c.b16 %v399, %v395
      %v524 = vpack.c.b16 %v400, %v396
      %v525 = vpack.c.b16 %v405, %v401
      %v526 = vpack.c.b16 %v406, %v402
      %v527 = vpack.c.b16 %v407, %v403
      %v528 = vpack.c.b16 %v408, %v404
      %v529 = vpack.c.b16 %v413, %v409
      %v530 = vpack.c.b16 %v414, %v410
      %v531 = vpack.c.b16 %v415, %v411
      %v532 = vpack.c.b16 %v416, %v412
      %v533 = vpack.c.b16 %v421, %v417
      %v534 = vpack.c.b16 %v422, %v418
      %v535 = vpack.c.b16 %v423, %v419
      %v536 = vpack.c.b16 %v424, %v420
      %v537 = vpack.c.b16 %v429, %v425
      %v538 = vpack.c.b16 %v430, %v426
      %v539 = vpack.c.b16 %v431, %v427
      %v540 = vpack.c.b16 %v432, %v428
      %v541 = vpack.c.b16 %v437, %v433
      %v542 = vpack.c.b16 %v438, %v434
      %v543 = vpack.c.b16 %v439, %v435
      %v544 = vpack.c.b16 %v440, %v436
      %v545 = vpack.c.b16 %v445, %v441
      %v546 = vpack.c.b16 %v446, %v442
      %v547 = vpack.c.b16 %v447, %v443
      %v548 = vpack.c.b16 %v448, %v444
      %v549 = vpack.c.b16 %v453, %v449
      %v550 = vpack.c.b16 %v454, %v450
      %v551 = vpack.c.b16 %v455, %v451
      %v552 = vpack.c.b16 %v456, %v452
      %v553 = vpack.c.b16 %v461, %v457
      %v554 = vpack.c.b16 %v462, %v458
      %v555 = vpack.c.b16 %v463, %v459
      %v556 = vpack.c.b16 %v464, %v460
      %v557 = vpack.c.b16 %v469, %v465
      %v558 = vpack.c.b16 %v470, %v466
      %v559 = vpack.c.b16 %v471, %v467
      %v560 = vpack.c.b16 %v472, %v468
      %v561 = vpack.c.b16 %v477, %v473
      %v562 = vpack.c.b16 %v478, %v474
      %v563 = vpack.c.b16 %v479, %v475
      %v564 = vpack.c.b16 %v480, %v476
      %v565 = vpack.c.b16 %v485, %v481
      %v566 = vpack.c.b16 %v486, %v482
      %v567 = vpack.c.b16 %v487, %v483
      %v568 = vpack.c.b16 %v488, %v484
      %v569 = vpack.c.b16 %v493, %v489
      %v570 = vpack.c.b16 %v494, %v490
      %v571 = vpack.c.b16 %v495, %v491
      %v572 = vpack.c.b16 %v496, %v492
      %v573 = vpack.c.b16 %v501, %v497
      %v574 = vpack.c.b16 %v502, %v498
      %v575 = vpack.c.b16 %v503, %v499
      %v576 = vpack.c.b16 %v504, %v500
      %v577 = vpack.c.b16 %v509, %v505
      %v578 = vpack.c.b16 %v510, %v506
      %v579 = vpack.c.b16 %v511, %v507
      %v580 = vpack.c.b16 %v512, %v508
      %v581 = vpack.c.b16 %v517, %v513
      %v582 = vpack.c.b16 %v518, %v514
      %v583 = vpack.c.b16 %v519, %v515
      %v584 = vpack.c.b16 %v520, %v516
      %649 = vmatpush.bf16.msra.mxu0 %v549
      %650 = vmatpush.bf16.msra.mxu0 %v545
      %651 = vmatpush.bf16.msra.mxu0 %v541
      %652 = vmatpush.bf16.msra.mxu0 %v537
      %653 = vmatpush.bf16.msra.mxu0 %v533
      %654 = vmatpush.bf16.msra.mxu0 %v529
      %655 = vmatpush.bf16.msra.mxu0 %v525
      %656 = vmatpush.bf16.msra.mxu0 %v521
      %657 = vmatmul.bf16.gmra.mxu0 %v247
      %v658 = vpop.f32.mrf.mxu0
      %v659 = vadd.f32 %v321, %v658
      %v660 = vpop.f32.mrf.mxu0
      %v661 = vadd.f32 %v321, %v660
      %662 = vmatmul.bf16.gmra.mxu0 %v249
      %v663 = vpop.f32.mrf.mxu0
      %v664 = vadd.f32 %v321, %v663
      %v665 = vpop.f32.mrf.mxu0
      %v666 = vadd.f32 %v321, %v665
      %667 = vmatmul.bf16.gmra.mxu0 %v251
      %v668 = vpop.f32.mrf.mxu0
      %v669 = vadd.f32 %v321, %v668
      %v670 = vpop.f32.mrf.mxu0
      %v671 = vadd.f32 %v321, %v670
      %672 = vmatmul.bf16.gmra.mxu0 %v253
      %v673 = vpop.f32.mrf.mxu0
      %v674 = vadd.f32 %v321, %v673
      %v675 = vpop.f32.mrf.mxu0
      %v676 = vadd.f32 %v321, %v675
      %677 = vdwg.mxu0
      %678 = vmatpush.bf16.msra.mxu0 %v581
      %679 = vmatpush.bf16.msra.mxu0 %v577
      %680 = vmatpush.bf16.msra.mxu0 %v573
      %681 = vmatpush.bf16.msra.mxu0 %v569
      %682 = vmatpush.bf16.msra.mxu0 %v565
      %683 = vmatpush.bf16.msra.mxu0 %v561
      %684 = vmatpush.bf16.msra.mxu0 %v557
      %685 = vmatpush.bf16.msra.mxu0 %v553
      %686 = vmatmul.bf16.gmra.mxu0 %v248
      %v687 = vpop.f32.mrf.mxu0
      %v688 = vadd.f32 %v659, %v687
      %v689 = vpop.f32.mrf.mxu0
      %v690 = vadd.f32 %v661, %v689
      %691 = vmatmul.bf16.gmra.mxu0 %v250
      %v692 = vpop.f32.mrf.mxu0
      %v693 = vadd.f32 %v664, %v692
      %v694 = vpop.f32.mrf.mxu0
      %v695 = vadd.f32 %v666, %v694
      %696 = vmatmul.bf16.gmra.mxu0 %v252
      %v697 = vpop.f32.mrf.mxu0
      %v698 = vadd.f32 %v669, %v697
      %v699 = vpop.f32.mrf.mxu0
      %v700 = vadd.f32 %v671, %v699
      %701 = vmatmul.bf16.gmra.mxu0 %v254
      %v702 = vpop.f32.mrf.mxu0
      %v703 = vadd.f32 %v674, %v702
      %v704 = vpop.f32.mrf.mxu0
      %v705 = vadd.f32 %v676, %v704
      %706 = vdwg.mxu0
      %707 = vmatpush.bf16.msra.mxu0 %v550
      %708 = vmatpush.bf16.msra.mxu0 %v546
      %709 = vmatpush.bf16.msra.mxu0 %v542
      %710 = vmatpush.bf16.msra.mxu0 %v538
      %711 = vmatpush.bf16.msra.mxu0 %v534
      %712 = vmatpush.bf16.msra.mxu0 %v530
      %713 = vmatpush.bf16.msra.mxu0 %v526
      %714 = vmatpush.bf16.msra.mxu0 %v522
      %715 = vmatmul.bf16.gmra.mxu0 %v247
      %v716 = vpop.f32.mrf.mxu0
      %v717 = vadd.f32 %v322, %v716
      %v718 = vpop.f32.mrf.mxu0
      %v719 = vadd.f32 %v322, %v718
      %720 = vmatmul.bf16.gmra.mxu0 %v249
      %v721 = vpop.f32.mrf.mxu0
      %v722 = vadd.f32 %v322, %v721
      %v723 = vpop.f32.mrf.mxu0
      %v724 = vadd.f32 %v322, %v723
      %725 = vmatmul.bf16.gmra.mxu0 %v251
      %v726 = vpop.f32.mrf.mxu0
      %v727 = vadd.f32 %v322, %v726
      %v728 = vpop.f32.mrf.mxu0
      %v729 = vadd.f32 %v322, %v728
      %730 = vmatmul.bf16.gmra.mxu0 %v253
      %v731 = vpop.f32.mrf.mxu0
      %v732 = vadd.f32 %v322, %v731
      %v733 = vpop.f32.mrf.mxu0
      %v734 = vadd.f32 %v322, %v733
      %735 = vdwg.mxu0
      %736 = vmatpush.bf16.msra.mxu0 %v582
      %737 = vmatpush.bf16.msra.mxu0 %v578
      %738 = vmatpush.bf16.msra.mxu0 %v574
      %739 = vmatpush.bf16.msra.mxu0 %v570
      %740 = vmatpush.bf16.msra.mxu0 %v566
      %741 = vmatpush.bf16.msra.mxu0 %v562
      %742 = vmatpush.bf16.msra.mxu0 %v558
      %743 = vmatpush.bf16.msra.mxu0 %v554
      %744 = vmatmul.bf16.gmra.mxu0 %v248
      %v745 = vpop.f32.mrf.mxu0
      %v746 = vadd.f32 %v717, %v745
      %v747 = vpop.f32.mrf.mxu0
      %v748 = vadd.f32 %v719, %v747
      %749 = vmatmul.bf16.gmra.mxu0 %v250
      %v750 = vpop.f32.mrf.mxu0
      %v751 = vadd.f32 %v722, %v750
      %v752 = vpop.f32.mrf.mxu0
      %v753 = vadd.f32 %v724, %v752
      %754 = vmatmul.bf16.gmra.mxu0 %v252
      %v755 = vpop.f32.mrf.mxu0
      %v756 = vadd.f32 %v727, %v755
      %v757 = vpop.f32.mrf.mxu0
      %v758 = vadd.f32 %v729, %v757
      %759 = vmatmul.bf16.gmra.mxu0 %v254
      %v760 = vpop.f32.mrf.mxu0
      %v761 = vadd.f32 %v732, %v760
      %v762 = vpop.f32.mrf.mxu0
      %v763 = vadd.f32 %v734, %v762
      %764 = vdwg.mxu0
      %765 = vmatpush.bf16.msra.mxu0 %v551
      %766 = vmatpush.bf16.msra.mxu0 %v547
      %767 = vmatpush.bf16.msra.mxu0 %v543
      %768 = vmatpush.bf16.msra.mxu0 %v539
      %769 = vmatpush.bf16.msra.mxu0 %v535
      %770 = vmatpush.bf16.msra.mxu0 %v531
      %771 = vmatpush.bf16.msra.mxu0 %v527
      %772 = vmatpush.bf16.msra.mxu0 %v523
      %773 = vmatmul.bf16.gmra.mxu0 %v247
      %v774 = vpop.f32.mrf.mxu0
      %v775 = vadd.f32 %v323, %v774
      %v776 = vpop.f32.mrf.mxu0
      %v777 = vadd.f32 %v323, %v776
      %778 = vmatmul.bf16.gmra.mxu0 %v249
      %v779 = vpop.f32.mrf.mxu0
      %v780 = vadd.f32 %v323, %v779
      %v781 = vpop.f32.mrf.mxu0
      %v782 = vadd.f32 %v323, %v781
      %783 = vmatmul.bf16.gmra.mxu0 %v251
      %v784 = vpop.f32.mrf.mxu0
      %v785 = vadd.f32 %v323, %v784
      %v786 = vpop.f32.mrf.mxu0
      %v787 = vadd.f32 %v323, %v786
      %788 = vmatmul.bf16.gmra.mxu0 %v253
      %v789 = vpop.f32.mrf.mxu0
      %v790 = vadd.f32 %v323, %v789
      %v791 = vpop.f32.mrf.mxu0
      %v792 = vadd.f32 %v323, %v791
      %793 = vdwg.mxu0
      %794 = vmatpush.bf16.msra.mxu0 %v583
      %795 = vmatpush.bf16.msra.mxu0 %v579
      %796 = vmatpush.bf16.msra.mxu0 %v575
      %797 = vmatpush.bf16.msra.mxu0 %v571
      %798 = vmatpush.bf16.msra.mxu0 %v567
      %799 = vmatpush.bf16.msra.mxu0 %v563
      %800 = vmatpush.bf16.msra.mxu0 %v559
      %801 = vmatpush.bf16.msra.mxu0 %v555
      %802 = vmatmul.bf16.gmra.mxu0 %v248
      %v803 = vpop.f32.mrf.mxu0
      %v804 = vadd.f32 %v775, %v803
      %v805 = vpop.f32.mrf.mxu0
      %v806 = vadd.f32 %v777, %v805
      %807 = vmatmul.bf16.gmra.mxu0 %v250
      %v808 = vpop.f32.mrf.mxu0
      %v809 = vadd.f32 %v780, %v808
      %v810 = vpop.f32.mrf.mxu0
      %v811 = vadd.f32 %v782, %v810
      %812 = vmatmul.bf16.gmra.mxu0 %v252
      %v813 = vpop.f32.mrf.mxu0
      %v814 = vadd.f32 %v785, %v813
      %v815 = vpop.f32.mrf.mxu0
      %v816 = vadd.f32 %v787, %v815
      %817 = vmatmul.bf16.gmra.mxu0 %v254
      %v818 = vpop.f32.mrf.mxu0
      %v819 = vadd.f32 %v790, %v818
      %v820 = vpop.f32.mrf.mxu0
      %v821 = vadd.f32 %v792, %v820
      %822 = vdwg.mxu0
      %823 = vmatpush.bf16.msra.mxu0 %v552
      %824 = vmatpush.bf16.msra.mxu0 %v548
      %825 = vmatpush.bf16.msra.mxu0 %v544
      %826 = vmatpush.bf16.msra.mxu0 %v540
      %827 = vmatpush.bf16.msra.mxu0 %v536
      %828 = vmatpush.bf16.msra.mxu0 %v532
      %829 = vmatpush.bf16.msra.mxu0 %v528
      %830 = vmatpush.bf16.msra.mxu0 %v524
      %831 = vmatmul.bf16.gmra.mxu0 %v247
      %v832 = vpop.f32.mrf.mxu0
      %v833 = vadd.f32 %v324, %v832
      %v834 = vpop.f32.mrf.mxu0
      %v835 = vadd.f32 %v324, %v834
      %836 = vmatmul.bf16.gmra.mxu0 %v249
      %v837 = vpop.f32.mrf.mxu0
      %v838 = vadd.f32 %v324, %v837
      %v839 = vpop.f32.mrf.mxu0
      %v840 = vadd.f32 %v324, %v839
      %841 = vmatmul.bf16.gmra.mxu0 %v251
      %v842 = vpop.f32.mrf.mxu0
      %v843 = vadd.f32 %v324, %v842
      %v844 = vpop.f32.mrf.mxu0
      %v845 = vadd.f32 %v324, %v844
      %846 = vmatmul.bf16.gmra.mxu0 %v253
      %v847 = vpop.f32.mrf.mxu0
      %v848 = vadd.f32 %v324, %v847
      %v849 = vpop.f32.mrf.mxu0
      %v850 = vadd.f32 %v324, %v849
      %851 = vdwg.mxu0
      %852 = vmatpush.bf16.msra.mxu0 %v584
      %853 = vmatpush.bf16.msra.mxu0 %v580
      %854 = vmatpush.bf16.msra.mxu0 %v576
      %855 = vmatpush.bf16.msra.mxu0 %v572
      %856 = vmatpush.bf16.msra.mxu0 %v568
      %857 = vmatpush.bf16.msra.mxu0 %v564
      %858 = vmatpush.bf16.msra.mxu0 %v560
      %859 = vmatpush.bf16.msra.mxu0 %v556
      %860 = vmatmul.bf16.gmra.mxu0 %v248
      %v861 = vpop.f32.mrf.mxu0
      %v862 = vadd.f32 %v833, %v861
      %v863 = vpop.f32.mrf.mxu0
      %v864 = vadd.f32 %v835, %v863
      %865 = vmatmul.bf16.gmra.mxu0 %v250
      %v866 = vpop.f32.mrf.mxu0
      %v867 = vadd.f32 %v838, %v866
      %v868 = vpop.f32.mrf.mxu0
      %v869 = vadd.f32 %v840, %v868
      %870 = vmatmul.bf16.gmra.mxu0 %v252
      %v871 = vpop.f32.mrf.mxu0
      %v872 = vadd.f32 %v843, %v871
      %v873 = vpop.f32.mrf.mxu0
      %v874 = vadd.f32 %v845, %v873
      %875 = vmatmul.bf16.gmra.mxu0 %v254
      %v876 = vpop.f32.mrf.mxu0
      %v877 = vadd.f32 %v848, %v876
      %v878 = vpop.f32.mrf.mxu0
      %v879 = vadd.f32 %v850, %v878
      %880 = vdwg.mxu0
      %vm881 = vcmp.gt.f32.partialorder %v688, 0.0
      %vm882 = vcmp.gt.f32.partialorder %v746, 0.0
      %vm883 = vcmp.gt.f32.partialorder %v804, 0.0
      %vm884 = vcmp.gt.f32.partialorder %v862, 0.0
      %vm885 = vcmp.gt.f32.partialorder %v690, 0.0
      %vm886 = vcmp.gt.f32.partialorder %v748, 0.0
      %vm887 = vcmp.gt.f32.partialorder %v806, 0.0
      %vm888 = vcmp.gt.f32.partialorder %v864, 0.0
      %vm889 = vcmp.gt.f32.partialorder %v693, 0.0
      %vm890 = vcmp.gt.f32.partialorder %v751, 0.0
      %vm891 = vcmp.gt.f32.partialorder %v809, 0.0
      %vm892 = vcmp.gt.f32.partialorder %v867, 0.0
      %vm893 = vcmp.gt.f32.partialorder %v695, 0.0
      %vm894 = vcmp.gt.f32.partialorder %v753, 0.0
      %vm895 = vcmp.gt.f32.partialorder %v811, 0.0
      %vm896 = vcmp.gt.f32.partialorder %v869, 0.0
      %vm897 = vcmp.gt.f32.partialorder %v698, 0.0
      %vm898 = vcmp.gt.f32.partialorder %v756, 0.0
      %vm899 = vcmp.gt.f32.partialorder %v814, 0.0
      %vm900 = vcmp.gt.f32.partialorder %v872, 0.0
      %vm901 = vcmp.gt.f32.partialorder %v700, 0.0
      %vm902 = vcmp.gt.f32.partialorder %v758, 0.0
      %vm903 = vcmp.gt.f32.partialorder %v816, 0.0
      %vm904 = vcmp.gt.f32.partialorder %v874, 0.0
      %vm905 = vcmp.gt.f32.partialorder %v703, 0.0
      %vm906 = vcmp.gt.f32.partialorder %v761, 0.0
      %vm907 = vcmp.gt.f32.partialorder %v819, 0.0
      %vm908 = vcmp.gt.f32.partialorder %v877, 0.0
      %vm909 = vcmp.gt.f32.partialorder %v705, 0.0
      %vm910 = vcmp.gt.f32.partialorder %v763, 0.0
      %vm911 = vcmp.gt.f32.partialorder %v821, 0.0
      %vm912 = vcmp.gt.f32.partialorder %v879, 0.0
      %v913 = vmul.f32 %v688, 0.01
      %v914 = vmul.f32 %v746, 0.01
      %v915 = vmul.f32 %v804, 0.01
      %v916 = vmul.f32 %v862, 0.01
      %v917 = vmul.f32 %v690, 0.01
      %v918 = vmul.f32 %v748, 0.01
      %v919 = vmul.f32 %v806, 0.01
      %v920 = vmul.f32 %v864, 0.01
      %v921 = vmul.f32 %v693, 0.01
      %v922 = vmul.f32 %v751, 0.01
      %v923 = vmul.f32 %v809, 0.01
      %v924 = vmul.f32 %v867, 0.01
      %v925 = vmul.f32 %v695, 0.01
      %v926 = vmul.f32 %v753, 0.01
      %v927 = vmul.f32 %v811, 0.01
      %v928 = vmul.f32 %v869, 0.01
      %v929 = vmul.f32 %v698, 0.01
      %v930 = vmul.f32 %v756, 0.01
      %v931 = vmul.f32 %v814, 0.01
      %v932 = vmul.f32 %v872, 0.01
      %v933 = vmul.f32 %v700, 0.01
      %v934 = vmul.f32 %v758, 0.01
      %v935 = vmul.f32 %v816, 0.01
      %v936 = vmul.f32 %v874, 0.01
      %v937 = vmul.f32 %v703, 0.01
      %v938 = vmul.f32 %v761, 0.01
      %v939 = vmul.f32 %v819, 0.01
      %v940 = vmul.f32 %v877, 0.01
      %v941 = vmul.f32 %v705, 0.01
      %v942 = vmul.f32 %v763, 0.01
      %v943 = vmul.f32 %v821, 0.01
      %v944 = vmul.f32 %v879, 0.01
      %v945 = vsel %vm881, %v688, %v913
      %v946 = vsel %vm882, %v746, %v914
      %v947 = vsel %vm883, %v804, %v915
      %v948 = vsel %vm884, %v862, %v916
      %v949 = vsel %vm885, %v690, %v917
      %v950 = vsel %vm886, %v748, %v918
      %v951 = vsel %vm887, %v806, %v919
      %v952 = vsel %vm888, %v864, %v920
      %v953 = vsel %vm889, %v693, %v921
      %v954 = vsel %vm890, %v751, %v922
      %v955 = vsel %vm891, %v809, %v923
      %v956 = vsel %vm892, %v867, %v924
      %v957 = vsel %vm893, %v695, %v925
      %v958 = vsel %vm894, %v753, %v926
      %v959 = vsel %vm895, %v811, %v927
      %v960 = vsel %vm896, %v869, %v928
      %v961 = vsel %vm897, %v698, %v929
      %v962 = vsel %vm898, %v756, %v930
      %v963 = vsel %vm899, %v814, %v931
      %v964 = vsel %vm900, %v872, %v932
      %v965 = vsel %vm901, %v700, %v933
      %v966 = vsel %vm902, %v758, %v934
      %v967 = vsel %vm903, %v816, %v935
      %v968 = vsel %vm904, %v874, %v936
      %v969 = vsel %vm905, %v703, %v937
      %v970 = vsel %vm906, %v761, %v938
      %v971 = vsel %vm907, %v819, %v939
      %v972 = vsel %vm908, %v877, %v940
      %v973 = vsel %vm909, %v705, %v941
      %v974 = vsel %vm910, %v763, %v942
      %v975 = vsel %vm911, %v821, %v943
      %v976 = vsel %vm912, %v879, %v944
      %v977 = vpack.c.bf16 %v949, %v945
      %v978 = vpack.c.bf16 %v950, %v946
      %v979 = vpack.c.bf16 %v951, %v947
      %v980 = vpack.c.bf16 %v952, %v948
      %v981 = vpack.c.bf16 %v957, %v953
      %v982 = vpack.c.bf16 %v958, %v954
      %v983 = vpack.c.bf16 %v959, %v955
      %v984 = vpack.c.bf16 %v960, %v956
      %v985 = vpack.c.bf16 %v965, %v961
      %v986 = vpack.c.bf16 %v966, %v962
      %v987 = vpack.c.bf16 %v967, %v963
      %v988 = vpack.c.bf16 %v968, %v964
      %v989 = vpack.c.bf16 %v973, %v969
      %v990 = vpack.c.bf16 %v974, %v970
      %v991 = vpack.c.bf16 %v975, %v971
      %v992 = vpack.c.bf16 %v976, %v972
      %v993 = vld [vmem:[%s3] sm:$0xf]
      %v994 = vld [vmem:[%s3 + $0x4] sm:$0xf]
      %v995 = vld [vmem:[%s3 + $0x8] sm:$0xf]
      %v996 = vld [vmem:[%s3 + $0xc] sm:$0xf]
      %v997 = vld [vmem:[%s3 + $0x10] sm:$0xf]
      %v998 = vld [vmem:[%s3 + $0x14] sm:$0xf]
      %v999 = vld [vmem:[%s3 + $0x18] sm:$0xf]
      %v1000 = vld [vmem:[%s3 + $0x1c] sm:$0xf]
      %v1001 = vld [vmem:[%s3 + $0x20] sm:$0xf]
      %v1002 = vld [vmem:[%s3 + $0x24] sm:$0xf]
      %v1003 = vld [vmem:[%s3 + $0x28] sm:$0xf]
      %v1004 = vld [vmem:[%s3 + $0x2c] sm:$0xf]
      %v1005 = vld [vmem:[%s3 + $0x30] sm:$0xf]
      %v1006 = vld [vmem:[%s3 + $0x34] sm:$0xf]
      %v1007 = vld [vmem:[%s3 + $0x38] sm:$0xf]
      %v1008 = vld [vmem:[%s3 + $0x3c] sm:$0xf]
      %v1009 = vld [vmem:[%s3 + $0x40] sm:$0xf]
      %v1010 = vld [vmem:[%s3 + $0x44] sm:$0xf]
      %v1011 = vld [vmem:[%s3 + $0x48] sm:$0xf]
      %v1012 = vld [vmem:[%s3 + $0x4c] sm:$0xf]
      %v1013 = vld [vmem:[%s3 + $0x50] sm:$0xf]
      %v1014 = vld [vmem:[%s3 + $0x54] sm:$0xf]
      %v1015 = vld [vmem:[%s3 + $0x58] sm:$0xf]
      %v1016 = vld [vmem:[%s3 + $0x5c] sm:$0xf]
      %v1017 = vld [vmem:[%s3 + $0x60] sm:$0xf]
      %v1018 = vld [vmem:[%s3 + $0x64] sm:$0xf]
      %v1019 = vld [vmem:[%s3 + $0x68] sm:$0xf]
      %v1020 = vld [vmem:[%s3 + $0x6c] sm:$0xf]
      %v1021 = vld [vmem:[%s3 + $0x70] sm:$0xf]
      %v1022 = vld [vmem:[%s3 + $0x74] sm:$0xf]
      %v1023 = vld [vmem:[%s3 + $0x78] sm:$0xf]
      %v1024 = vld [vmem:[%s3 + $0x7c] sm:$0xf]
      %v1025 = vld [vmem:[%s3 + $0x80] sm:$0xf]
      %v1026 = vld [vmem:[%s3 + $0x84] sm:$0xf]
      %v1027 = vld [vmem:[%s3 + $0x88] sm:$0xf]
      %v1028 = vld [vmem:[%s3 + $0x8c] sm:$0xf]
      %v1029 = vld [vmem:[%s3 + $0x90] sm:$0xf]
      %v1030 = vld [vmem:[%s3 + $0x94] sm:$0xf]
      %v1031 = vld [vmem:[%s3 + $0x98] sm:$0xf]
      %v1032 = vld [vmem:[%s3 + $0x9c] sm:$0xf]
      %v1033 = vld [vmem:[%s3 + $0xa0] sm:$0xf]
      %v1034 = vld [vmem:[%s3 + $0xa4] sm:$0xf]
      %v1035 = vld [vmem:[%s3 + $0xa8] sm:$0xf]
      %v1036 = vld [vmem:[%s3 + $0xac] sm:$0xf]
      %v1037 = vld [vmem:[%s3 + $0xb0] sm:$0xf]
      %v1038 = vld [vmem:[%s3 + $0xb4] sm:$0xf]
      %v1039 = vld [vmem:[%s3 + $0xb8] sm:$0xf]
      %v1040 = vld [vmem:[%s3 + $0xbc] sm:$0xf]
      %v1041 = vld [vmem:[%s3 + $0xc0] sm:$0xf]
      %v1042 = vld [vmem:[%s3 + $0xc4] sm:$0xf]
      %v1043 = vld [vmem:[%s3 + $0xc8] sm:$0xf]
      %v1044 = vld [vmem:[%s3 + $0xcc] sm:$0xf]
      %v1045 = vld [vmem:[%s3 + $0xd0] sm:$0xf]
      %v1046 = vld [vmem:[%s3 + $0xd4] sm:$0xf]
      %v1047 = vld [vmem:[%s3 + $0xd8] sm:$0xf]
      %v1048 = vld [vmem:[%s3 + $0xdc] sm:$0xf]
      %v1049 = vld [vmem:[%s3 + $0xe0] sm:$0xf]
      %v1050 = vld [vmem:[%s3 + $0xe4] sm:$0xf]
      %v1051 = vld [vmem:[%s3 + $0xe8] sm:$0xf]
      %v1052 = vld [vmem:[%s3 + $0xec] sm:$0xf]
      %v1053 = vld [vmem:[%s3 + $0xf0] sm:$0xf]
      %v1054 = vld [vmem:[%s3 + $0xf4] sm:$0xf]
      %v1055 = vld [vmem:[%s3 + $0xf8] sm:$0xf]
      %v1056 = vld [vmem:[%s3 + $0xfc] sm:$0xf]
      %v1057 = vld [vmem:[%s4] sm:$0x1]
      %v1059 = vperm.slane %v1057, 0
      %v1125 = vunpack.c.l.b16 %v993
      %v1126 = vunpack.c.l.b16 %v994
      %v1127 = vunpack.c.l.b16 %v995
      %v1128 = vunpack.c.l.b16 %v996
      %v1129 = vunpack.c.l.b16 %v997
      %v1130 = vunpack.c.l.b16 %v998
      %v1131 = vunpack.c.l.b16 %v999
      %v1132 = vunpack.c.l.b16 %v1000
      %v1133 = vunpack.c.l.b16 %v1001
      %v1134 = vunpack.c.l.b16 %v1002
      %v1135 = vunpack.c.l.b16 %v1003
      %v1136 = vunpack.c.l.b16 %v1004
      %v1137 = vunpack.c.l.b16 %v1005
      %v1138 = vunpack.c.l.b16 %v1006
      %v1139 = vunpack.c.l.b16 %v1007
      %v1140 = vunpack.c.l.b16 %v1008
      %v1141 = vunpack.c.l.b16 %v1009
      %v1142 = vunpack.c.l.b16 %v1010
      %v1143 = vunpack.c.l.b16 %v1011
      %v1144 = vunpack.c.l.b16 %v1012
      %v1145 = vunpack.c.l.b16 %v1013
      %v1146 = vunpack.c.l.b16 %v1014
      %v1147 = vunpack.c.l.b16 %v1015
      %v1148 = vunpack.c.l.b16 %v1016
      %v1149 = vunpack.c.l.b16 %v1017
      %v1150 = vunpack.c.l.b16 %v1018
      %v1151 = vunpack.c.l.b16 %v1019
      %v1152 = vunpack.c.l.b16 %v1020
      %v1153 = vunpack.c.l.b16 %v1021
      %v1154 = vunpack.c.l.b16 %v1022
      %v1155 = vunpack.c.l.b16 %v1023
      %v1156 = vunpack.c.l.b16 %v1024
      %v1157 = vunpack.c.l.b16 %v1025
      %v1158 = vunpack.c.l.b16 %v1026
      %v1159 = vunpack.c.l.b16 %v1027
      %v1160 = vunpack.c.l.b16 %v1028
      %v1161 = vunpack.c.l.b16 %v1029
      %v1162 = vunpack.c.l.b16 %v1030
      %v1163 = vunpack.c.l.b16 %v1031
      %v1164 = vunpack.c.l.b16 %v1032
      %v1165 = vunpack.c.l.b16 %v1033
      %v1166 = vunpack.c.l.b16 %v1034
      %v1167 = vunpack.c.l.b16 %v1035
      %v1168 = vunpack.c.l.b16 %v1036
      %v1169 = vunpack.c.l.b16 %v1037
      %v1170 = vunpack.c.l.b16 %v1038
      %v1171 = vunpack.c.l.b16 %v1039
      %v1172 = vunpack.c.l.b16 %v1040
      %v1173 = vunpack.c.l.b16 %v1041
      %v1174 = vunpack.c.l.b16 %v1042
      %v1175 = vunpack.c.l.b16 %v1043
      %v1176 = vunpack.c.l.b16 %v1044
      %v1177 = vunpack.c.l.b16 %v1045
      %v1178 = vunpack.c.l.b16 %v1046
      %v1179 = vunpack.c.l.b16 %v1047
      %v1180 = vunpack.c.l.b16 %v1048
      %v1181 = vunpack.c.l.b16 %v1049
      %v1182 = vunpack.c.l.b16 %v1050
      %v1183 = vunpack.c.l.b16 %v1051
      %v1184 = vunpack.c.l.b16 %v1052
      %v1185 = vunpack.c.l.b16 %v1053
      %v1186 = vunpack.c.l.b16 %v1054
      %v1187 = vunpack.c.l.b16 %v1055
      %v1188 = vunpack.c.l.b16 %v1056
      %v1189 = vpack.c.b16 %v1126, %v1125
      %v1190 = vpack.c.b16 %v1128, %v1127
      %v1191 = vpack.c.b16 %v1130, %v1129
      %v1192 = vpack.c.b16 %v1132, %v1131
      %v1193 = vpack.c.b16 %v1134, %v1133
      %v1194 = vpack.c.b16 %v1136, %v1135
      %v1195 = vpack.c.b16 %v1138, %v1137
      %v1196 = vpack.c.b16 %v1140, %v1139
      %v1197 = vpack.c.b16 %v1142, %v1141
      %v1198 = vpack.c.b16 %v1144, %v1143
      %v1199 = vpack.c.b16 %v1146, %v1145
      %v1200 = vpack.c.b16 %v1148, %v1147
      %v1201 = vpack.c.b16 %v1150, %v1149
      %v1202 = vpack.c.b16 %v1152, %v1151
      %v1203 = vpack.c.b16 %v1154, %v1153
      %v1204 = vpack.c.b16 %v1156, %v1155
      %v1205 = vpack.c.b16 %v1158, %v1157
      %v1206 = vpack.c.b16 %v1160, %v1159
      %v1207 = vpack.c.b16 %v1162, %v1161
      %v1208 = vpack.c.b16 %v1164, %v1163
      %v1209 = vpack.c.b16 %v1166, %v1165
      %v1210 = vpack.c.b16 %v1168, %v1167
      %v1211 = vpack.c.b16 %v1170, %v1169
      %v1212 = vpack.c.b16 %v1172, %v1171
      %v1213 = vpack.c.b16 %v1174, %v1173
      %v1214 = vpack.c.b16 %v1176, %v1175
      %v1215 = vpack.c.b16 %v1178, %v1177
      %v1216 = vpack.c.b16 %v1180, %v1179
      %v1217 = vpack.c.b16 %v1182, %v1181
      %v1218 = vpack.c.b16 %v1184, %v1183
      %v1219 = vpack.c.b16 %v1186, %v1185
      %v1220 = vpack.c.b16 %v1188, %v1187
      %1253 = vmatpush.bf16.msra.mxu0 %v1196
      %1254 = vmatpush.bf16.msra.mxu0 %v1195
      %1255 = vmatpush.bf16.msra.mxu0 %v1194
      %1256 = vmatpush.bf16.msra.mxu0 %v1193
      %1257 = vmatpush.bf16.msra.mxu0 %v1192
      %1258 = vmatpush.bf16.msra.mxu0 %v1191
      %1259 = vmatpush.bf16.msra.mxu0 %v1190
      %1260 = vmatpush.bf16.msra.mxu0 %v1189
      %1261 = vmatmul.bf16.gmra.mxu0 %v977
      %v1262 = vpop.f32.mrf.mxu0
      %v1263 = vadd.f32 %v1059, %v1262
      %v1264 = vpop.f32.mrf.mxu0
      %v1265 = vadd.f32 %v1059, %v1264
      %1266 = vmatmul.bf16.gmra.mxu0 %v981
      %v1267 = vpop.f32.mrf.mxu0
      %v1268 = vadd.f32 %v1059, %v1267
      %v1269 = vpop.f32.mrf.mxu0
      %v1270 = vadd.f32 %v1059, %v1269
      %1271 = vmatmul.bf16.gmra.mxu0 %v985
      %v1272 = vpop.f32.mrf.mxu0
      %v1273 = vadd.f32 %v1059, %v1272
      %v1274 = vpop.f32.mrf.mxu0
      %v1275 = vadd.f32 %v1059, %v1274
      %1276 = vmatmul.bf16.gmra.mxu0 %v989
      %v1277 = vpop.f32.mrf.mxu0
      %v1278 = vadd.f32 %v1059, %v1277
      %v1279 = vpop.f32.mrf.mxu0
      %v1280 = vadd.f32 %v1059, %v1279
      %1281 = vdwg.mxu0
      %1282 = vmatpush.bf16.msra.mxu0 %v1204
      %1283 = vmatpush.bf16.msra.mxu0 %v1203
      %1284 = vmatpush.bf16.msra.mxu0 %v1202
      %1285 = vmatpush.bf16.msra.mxu0 %v1201
      %1286 = vmatpush.bf16.msra.mxu0 %v1200
      %1287 = vmatpush.bf16.msra.mxu0 %v1199
      %1288 = vmatpush.bf16.msra.mxu0 %v1198
      %1289 = vmatpush.bf16.msra.mxu0 %v1197
      %1290 = vmatmul.bf16.gmra.mxu0 %v978
      %v1291 = vpop.f32.mrf.mxu0
      %v1292 = vadd.f32 %v1263, %v1291
      %v1293 = vpop.f32.mrf.mxu0
      %v1294 = vadd.f32 %v1265, %v1293
      %1295 = vmatmul.bf16.gmra.mxu0 %v982
      %v1296 = vpop.f32.mrf.mxu0
      %v1297 = vadd.f32 %v1268, %v1296
      %v1298 = vpop.f32.mrf.mxu0
      %v1299 = vadd.f32 %v1270, %v1298
      %1300 = vmatmul.bf16.gmra.mxu0 %v986
      %v1301 = vpop.f32.mrf.mxu0
      %v1302 = vadd.f32 %v1273, %v1301
      %v1303 = vpop.f32.mrf.mxu0
      %v1304 = vadd.f32 %v1275, %v1303
      %1305 = vmatmul.bf16.gmra.mxu0 %v990
      %v1306 = vpop.f32.mrf.mxu0
      %v1307 = vadd.f32 %v1278, %v1306
      %v1308 = vpop.f32.mrf.mxu0
      %v1309 = vadd.f32 %v1280, %v1308
      %1310 = vdwg.mxu0
      %1311 = vmatpush.bf16.msra.mxu0 %v1212
      %1312 = vmatpush.bf16.msra.mxu0 %v1211
      %1313 = vmatpush.bf16.msra.mxu0 %v1210
      %1314 = vmatpush.bf16.msra.mxu0 %v1209
      %1315 = vmatpush.bf16.msra.mxu0 %v1208
      %1316 = vmatpush.bf16.msra.mxu0 %v1207
      %1317 = vmatpush.bf16.msra.mxu0 %v1206
      %1318 = vmatpush.bf16.msra.mxu0 %v1205
      %1319 = vmatmul.bf16.gmra.mxu0 %v979
      %v1320 = vpop.f32.mrf.mxu0
      %v1321 = vadd.f32 %v1292, %v1320
      %v1322 = vpop.f32.mrf.mxu0
      %v1323 = vadd.f32 %v1294, %v1322
      %1324 = vmatmul.bf16.gmra.mxu0 %v983
      %v1325 = vpop.f32.mrf.mxu0
      %v1326 = vadd.f32 %v1297, %v1325
      %v1327 = vpop.f32.mrf.mxu0
      %v1328 = vadd.f32 %v1299, %v1327
      %1329 = vmatmul.bf16.gmra.mxu0 %v987
      %v1330 = vpop.f32.mrf.mxu0
      %v1331 = vadd.f32 %v1302, %v1330
      %v1332 = vpop.f32.mrf.mxu0
      %v1333 = vadd.f32 %v1304, %v1332
      %1334 = vmatmul.bf16.gmra.mxu0 %v991
      %v1335 = vpop.f32.mrf.mxu0
      %v1336 = vadd.f32 %v1307, %v1335
      %v1337 = vpop.f32.mrf.mxu0
      %v1338 = vadd.f32 %v1309, %v1337
      %1339 = vdwg.mxu0
      %1340 = vmatpush.bf16.msra.mxu0 %v1220
      %1341 = vmatpush.bf16.msra.mxu0 %v1219
      %1342 = vmatpush.bf16.msra.mxu0 %v1218
      %1343 = vmatpush.bf16.msra.mxu0 %v1217
      %1344 = vmatpush.bf16.msra.mxu0 %v1216
      %1345 = vmatpush.bf16.msra.mxu0 %v1215
      %1346 = vmatpush.bf16.msra.mxu0 %v1214
      %1347 = vmatpush.bf16.msra.mxu0 %v1213
      %1348 = vmatmul.bf16.gmra.mxu0 %v980
      %v1349 = vpop.f32.mrf.mxu0
      %v1350 = vadd.f32 %v1321, %v1349
      %v1351 = vpop.f32.mrf.mxu0
      %v1352 = vadd.f32 %v1323, %v1351
      %1353 = vmatmul.bf16.gmra.mxu0 %v984
      %v1354 = vpop.f32.mrf.mxu0
      %v1355 = vadd.f32 %v1326, %v1354
      %v1356 = vpop.f32.mrf.mxu0
      %v1357 = vadd.f32 %v1328, %v1356
      %1358 = vmatmul.bf16.gmra.mxu0 %v988
      %v1359 = vpop.f32.mrf.mxu0
      %v1360 = vadd.f32 %v1331, %v1359
      %v1361 = vpop.f32.mrf.mxu0
      %v1362 = vadd.f32 %v1333, %v1361
      %1363 = vmatmul.bf16.gmra.mxu0 %v992
      %v1364 = vpop.f32.mrf.mxu0
      %v1365 = vadd.f32 %v1336, %v1364
      %v1366 = vpop.f32.mrf.mxu0
      %v1367 = vadd.f32 %v1338, %v1366
      %1368 = vdwg.mxu0
      %1369 = vst [vmem:[%s229] sm:$0xff] %v1350
      %1370 = vst [vmem:[%s229 + $0x8] sm:$0xff] %v1352
      %1371 = vst [vmem:[%s229 + $0x10] sm:$0xff] %v1355
      %1372 = vst [vmem:[%s229 + $0x18] sm:$0xff] %v1357
      %1373 = vst [vmem:[%s229 + $0x20] sm:$0xff] %v1360
      %1374 = vst [vmem:[%s229 + $0x28] sm:$0xff] %v1362
      %1375 = vst [vmem:[%s229 + $0x30] sm:$0xff] %v1365
      %1376 = vst [vmem:[%s229 + $0x38] sm:$0xff] %v1367
      %s1377 = smul.u32 8, %s16
      %p1378 = scmp.lt.s32.totalorder %s1377, 15
      %s1379 = scalar_select %p1378, %s1377, 15
      %s1380 = smul.addr %s1379, 8
      %s1381 = scalar_lea.vmem %s5, %s1380
      // Predicated region
      $region41: #{net_forward.1} parent=39 // pred_check
        %p1382 = pneg %p144
      $region42: #{net_forward.1} parent=39 // pred_check_branch
        %1384 = sbr.rel (%p1382) target = $region44
      $region43: #{net_forward.1} parent=39 // pred_region
        %s1385 = smul.u32 8, %s16
      $region44: #{net_forward.1} parent=39 // pred_fallthru
        _
    $region40: #{net_forward.1} parent=5 // pred_fallthru
      _
    %p1386 = scmp.le.s32.totalorder 2, %s11
    // Predicated region
    $region45: #{net_forward.1} parent=5 // pred_check
      %p1387 = pneg %p1386
    $region46: #{net_forward.1} parent=5 // pred_check_branch
      %1389 = sbr.rel (%p1387) target = $region48
    $region47: #{net_forward.1} parent=5 // pred_region
      %s1390 = ssub.s32 %s11, 2
      // Predicated region
      $region49: #{net_forward.1} parent=47 // pred_check
        %p1391 = pneg %p150
      $region50: #{net_forward.1} parent=47 // pred_check_branch
        %1393 = sbr.rel (%p1391) target = $region52
      $region51: #{net_forward.1} parent=47 // pred_region
        %s1394 = smul.u32 8, %s17
        %p1395 = scmp.lt.s32.totalorder %s1394, 15
        %s1396 = scalar_select %p1395, %s1394, 15
        %s1397 = smul.addr %s1396, 8
        %s1398 = scalar_lea.vmem %s5, %s1397
      $region52: #{net_forward.1} parent=47 // pred_fallthru
        _
    $region48: #{net_forward.1} parent=5 // pred_fallthru
      _
  $region6: #{net_forward.1} parent=0 // loop_footer
    %s15 = sadd.s32 1, %s11
  $region7: #{net_forward.1} parent=0 // loop_footer_branch
    %10 = sbr.rel target = $region3
  $region8: #{net_forward.1} parent=0 // loop_exit
    _

</llo_original>
